<compile_context>
chip_gen: v5e
topology: v5e:2x2
jax: 0.10.0
libtpu: 0.0.40
codegen_flags: <defaults>
</compile_context>

<pallas_src>
import functools

import jax
import jax.numpy as jnp
from jax.experimental import pallas as pl
from jax.experimental.pallas import tpu as pltpu


def _round_up(n, m):
    return ((n + m - 1) // m) * m


def _decoder_kernel(x_ref, w1_ref, b1_ref, w2_ref, b2_ref, o_ref, *,
                    compute_dtype, exact_sigmoid):
    # x_ref:  (TB, D)  f32 batch tile (cast to compute_dtype here, not in the wrapper)
    # w1_ref: (D, H)   compute_dtype, resident across the grid (constant index_map)
    # b1_ref: (1, H)   f32
    # w2_ref: (H, O)   compute_dtype, resident
    # b2_ref: (1, O)   f32
    # o_ref:  (TB, O)  out_dtype
    x = x_ref[...].astype(compute_dtype)
    # First linear: MXU matmul with f32 accumulation, bias add + ReLU in f32.
    h = jnp.dot(x, w1_ref[...], preferred_element_type=jnp.float32) + b1_ref[...]
    h = jnp.maximum(h, 0.0).astype(w2_ref.dtype)
    # Second linear: MXU in the weight dtype (bf16 fast path), f32 accumulation.
    y = jnp.dot(h, w2_ref[...], preferred_element_type=jnp.float32) + b2_ref[...]
    if exact_sigmoid:
        s = jax.nn.sigmoid(y)
    else:
        # EUP exp + EUP approximate reciprocal -> epilogue stays off the VALU slots.
        s = pl.reciprocal(1.0 + jnp.exp(-y), approx=True)
    o_ref[...] = s.astype(o_ref.dtype)


@functools.partial(
    jax.jit,
    static_argnames=("heatmap_size", "batch_tile", "use_bf16", "out_dtype"),
)
def detection_decoder_forward(
    x, w1, b1, w2, b2, *, heatmap_size=16, batch_tile=2048, use_bf16=True,
    out_dtype=jnp.float32,
):
    """Fused MLP decoder forward.  x: [B, input_dim] -> [B, hm, hm].

    Performance path: use_bf16=True (default) and out_dtype=jnp.bfloat16 (the
    [B, 256] output store is ~94% of the kernel's HBM traffic; bf16 halves it).
    Exact-parity path: use_bf16=False, out_dtype=jnp.float32.
    """
    B, D = x.shape
    H = w1.shape[1]
    O = w2.shape[1]
    assert O == heatmap_size * heatmap_size

    # ---- batch tiling --------------------------------------------------------
    # Multiple of 8 (sublane), never larger than needed, capped by batch_tile,
    # and small enough that large batches get >= 4 grid steps so the "parallel"
    # axis can be sharded across v7x's 2 TensorCores.  Ragged last block is
    # handled by Pallas masking (no pad / slice round trips over HBM).
    tb = min(batch_tile, _round_up(B, 8))
    tb = min(tb, max(_round_up(pl.cdiv(B, 4), 8), 8))
    grid = (pl.cdiv(B, tb),)

    # ---- operand dtypes ------------------------------------------------------
    # Weights/biases are tiny -> cast once in the wrapper.  x stays f32 and is
    # cast inside the kernel to avoid an extra HBM pass over [B, D].
    op_dtype = jnp.bfloat16 if use_bf16 else x.dtype
    w1_in = w1.astype(op_dtype)
    w2_in = w2.astype(op_dtype)
    b1_in = b1.astype(jnp.float32).reshape(1, H)
    b2_in = b2.astype(jnp.float32).reshape(1, O)

    # ---- VMEM budget ---------------------------------------------------------
    # Pipelined tiles (double-buffered) + resident weights/biases + the
    # compiler-managed f32 intermediates (x cast, h, relu/cast, y, sigmoid).
    x_sz = jnp.dtype(x.dtype).itemsize
    w_sz = jnp.dtype(op_dtype).itemsize
    out_sz = jnp.dtype(out_dtype).itemsize
    est = (
        2 * tb * D * x_sz                  # x tile, double-buffered
        + 2 * tb * O * out_sz              # output tile, double-buffered
        + 2 * (D * H + H * O) * w_sz       # W1 / W2 (fetched once, 2 buffers)
        + 2 * 2 * (H + O) * 4              # b1 / b2
        + tb * (D + 2 * H + 2 * O) * 4     # f32 intermediates inside the body
    )
    vmem_limit = int(min(32 << 20, max(4 << 20, est + est // 2)))

    kernel = functools.partial(
        _decoder_kernel,
        compute_dtype=op_dtype,
        exact_sigmoid=not use_bf16,
    )

    out = pl.pallas_call(
        kernel,
        out_shape=jax.ShapeDtypeStruct((B, O), out_dtype),
        grid=grid,
        in_specs=[
            pl.BlockSpec((tb, D), lambda i: (i, 0)),   # x tile per step (f32)
            pl.BlockSpec((D, H), lambda i: (0, 0)),    # W1 (resident)
            pl.BlockSpec((1, H), lambda i: (0, 0)),    # b1
            pl.BlockSpec((H, O), lambda i: (0, 0)),    # W2 (resident)
            pl.BlockSpec((1, O), lambda i: (0, 0)),    # b2
        ],
        out_specs=pl.BlockSpec((tb, O), lambda i: (i, 0)),
        compiler_params=pltpu.CompilerParams(
            dimension_semantics=("parallel",),
            vmem_limit_bytes=vmem_limit,
        ),
    )(x, w1_in, b1_in, w2_in, b2_in)

    # .view(-1, heatmap_size, heatmap_size) equivalent (no slicing needed).
    return out.reshape(-1, heatmap_size, heatmap_size)


def init_params(key, input_dim, hidden_dim, heatmap_size):
    """Deterministic PyTorch-style (uniform +-1/sqrt(fan_in)) init."""
    output_size = heatmap_size * heatmap_size
    k1, k2, k3, k4 = jax.random.split(key, 4)
    lim1 = 1.0 / jnp.sqrt(jnp.float32(input_dim))
    lim2 = 1.0 / jnp.sqrt(jnp.float32(hidden_dim))
    w1 = jax.random.uniform(k1, (input_dim, hidden_dim), jnp.float32, -lim1, lim1)
    b1 = jax.random.uniform(k2, (1, hidden_dim), jnp.float32, -lim1, lim1)
    w2 = jax.random.uniform(k3, (hidden_dim, output_size), jnp.float32, -lim2, lim2)
    b2 = jax.random.uniform(k4, (1, output_size), jnp.float32, -lim2, lim2)
    return w1, b1, w2, b2


def _reference(x, w1, b1, w2, b2, heatmap_size):
    return jax.nn.sigmoid(
        jnp.maximum(x @ w1 + b1, 0.0) @ w2 + b2
    ).reshape(-1, heatmap_size, heatmap_size)


if __name__ == "__main__":
    # Small shapes consistent with the module's forward: x is [B, input_dim].
    B, INPUT_DIM, HIDDEN_DIM, HEATMAP = 8, 32, 64, 16

    key = jax.random.PRNGKey(0)
    kx, kp = jax.random.split(key)
    x = jax.random.normal(kx, (B, INPUT_DIM), jnp.float32)
    w1, b1, w2, b2 = init_params(kp, INPUT_DIM, HIDDEN_DIM, HEATMAP)

    ref = _reference(x, w1, b1, w2, b2, HEATMAP)

    # 1) Exact f32 parity path: tight tolerance against the plain-JAX reference.
    out_f32 = detection_decoder_forward(
        x, w1, b1, w2, b2, heatmap_size=HEATMAP, use_bf16=False
    )
    out_f32 = jax.block_until_ready(out_f32)
    assert out_f32.shape == (B, HEATMAP, HEATMAP)
    assert jnp.allclose(out_f32, ref, atol=1e-5, rtol=1e-5)

    # 2) Default bf16-operand path (f32 accumulation, f32 output).
    out_bf = detection_decoder_forward(
        x, w1, b1, w2, b2, heatmap_size=HEATMAP
    )
    out_bf = jax.block_until_ready(out_bf)
    assert out_bf.shape == (B, HEATMAP, HEATMAP)
    assert jnp.allclose(out_bf, ref, atol=2e-2)

    # 3) Ragged batch + multi-step grid + bf16 output performance path
    #    (exercises Pallas boundary masking on the partial final block).
    B2 = 50
    x2 = jax.random.normal(jax.random.PRNGKey(1), (B2, INPUT_DIM), jnp.float32)
    ref2 = _reference(x2, w1, b1, w2, b2, HEATMAP)
    out2 = detection_decoder_forward(
        x2, w1, b1, w2, b2, heatmap_size=HEATMAP, batch_tile=16,
        out_dtype=jnp.bfloat16,
    )
    out2 = jax.block_until_ready(out2)
    assert out2.shape == (B2, HEATMAP, HEATMAP)
    assert out2.dtype == jnp.bfloat16
    assert jnp.allclose(out2.astype(jnp.float32), ref2, atol=2e-2)

    print("KERNEL_OK")
</pallas_src>

<mosaic_0001>
module attributes {stable_mosaic.version = 11 : i64} {
  func.func @_decoder_kernel(%arg0: i32, %arg1: memref<8x32xf32, #tpu.memory_space<vmem>>, %arg2: memref<32x64xf32, #tpu.memory_space<vmem>>, %arg3: memref<1x64xf32, #tpu.memory_space<vmem>>, %arg4: memref<64x256xf32, #tpu.memory_space<vmem>>, %arg5: memref<1x256xf32, #tpu.memory_space<vmem>>, %arg6: memref<8x256xf32, #tpu.memory_space<vmem>>) attributes {dimension_semantics = [#tpu.dimension_semantics<parallel>], iteration_bounds = array<i64: 1>, scalar_prefetch = 0 : i64, scratch_operands = 0 : i64, tpu.core_type = #tpu.core_type<tc>, window_params = [{transform_indices = @transform_0, window_bounds = array<i64: 8, 32>}, {pipeline_mode = #tpu.pipeline_mode<synchronous>, transform_indices = @transform_1, window_bounds = array<i64: 32, 64>}, {pipeline_mode = #tpu.pipeline_mode<synchronous>, transform_indices = @transform_2, window_bounds = array<i64: 1, 64>}, {pipeline_mode = #tpu.pipeline_mode<synchronous>, transform_indices = @transform_3, window_bounds = array<i64: 64, 256>}, {pipeline_mode = #tpu.pipeline_mode<synchronous>, transform_indices = @transform_4, window_bounds = array<i64: 1, 256>}, {transform_indices = @transform_5, window_bounds = array<i64: 8, 256>}]} {
    %c0 = arith.constant 0 : index
    %c0_0 = arith.constant 0 : index
    %0 = vector.load %arg1[%c0, %c0_0] : memref<8x32xf32, #tpu.memory_space<vmem>>, vector<8x32xf32>
    %c0_1 = arith.constant 0 : index
    %c0_2 = arith.constant 0 : index
    %1 = vector.load %arg2[%c0_1, %c0_2] : memref<32x64xf32, #tpu.memory_space<vmem>>, vector<32x64xf32>
    %cst = arith.constant dense<0.000000e+00> : vector<8x64xf32>
    %2 = tpu.matmul %0, %1, %cst {dimension_numbers = #tpu.dot_dimension_numbers<[1], [0], [0], [1], [0, 0, 1, 1], [], []>} : vector<8x32xf32>, vector<32x64xf32>, vector<8x64xf32> -> vector<8x64xf32>
    %c0_3 = arith.constant 0 : index
    %c0_4 = arith.constant 0 : index
    %3 = vector.load %arg3[%c0_3, %c0_4] : memref<1x64xf32, #tpu.memory_space<vmem>>, vector<1x64xf32>
    %4 = vector.broadcast %3 : vector<1x64xf32> to vector<8x64xf32>
    %5 = arith.addf %2, %4 : vector<8x64xf32>
    %cst_5 = arith.constant 0.000000e+00 : f32
    %6 = vector.broadcast %cst_5 : f32 to vector<8x64xf32>
    %7 = arith.maximumf %5, %6 : vector<8x64xf32>
    %c0_6 = arith.constant 0 : index
    %c0_7 = arith.constant 0 : index
    %8 = vector.load %arg4[%c0_6, %c0_7] : memref<64x256xf32, #tpu.memory_space<vmem>>, vector<64x256xf32>
    %cst_8 = arith.constant dense<0.000000e+00> : vector<8x256xf32>
    %9 = tpu.matmul %7, %8, %cst_8 {dimension_numbers = #tpu.dot_dimension_numbers<[1], [0], [0], [1], [0, 0, 1, 1], [], []>} : vector<8x64xf32>, vector<64x256xf32>, vector<8x256xf32> -> vector<8x256xf32>
    %c0_9 = arith.constant 0 : index
    %c0_10 = arith.constant 0 : index
    %10 = vector.load %arg5[%c0_9, %c0_10] : memref<1x256xf32, #tpu.memory_space<vmem>>, vector<1x256xf32>
    %11 = vector.broadcast %10 : vector<1x256xf32> to vector<8x256xf32>
    %12 = arith.addf %9, %11 : vector<8x256xf32>
    %13 = arith.negf %12 : vector<8x256xf32>
    %14 = math.exp %13 : vector<8x256xf32>
    %cst_11 = arith.constant 1.000000e+00 : f32
    %15 = vector.broadcast %cst_11 : f32 to vector<8x256xf32>
    %16 = arith.addf %15, %14 : vector<8x256xf32>
    %17 = arith.divf %15, %16 : vector<8x256xf32>
    %c0_12 = arith.constant 0 : index
    %c0_13 = arith.constant 0 : index
    %18 = vector.load %arg6[%c0_12, %c0_13] : memref<8x256xf32, #tpu.memory_space<vmem>>, vector<8x256xf32>
    tpu.vector_store %arg6[%c0_12, %c0_13], %17 {strides = array<i32>} : memref<8x256xf32, #tpu.memory_space<vmem>>, vector<8x256xf32>,
    return
  }
  func.func @transform_0(%arg0: i32) -> (i32, i32) {
    %c0_i32 = arith.constant 0 : i32
    %c0_i32_0 = arith.constant 0 : i32
    return %arg0, %c0_i32 : i32, i32
  }
  func.func @transform_1(%arg0: i32) -> (i32, i32) {
    %c0_i32 = arith.constant 0 : i32
    %c0_i32_0 = arith.constant 0 : i32
    %c0_i32_1 = arith.constant 0 : i32
    return %c0_i32, %c0_i32_0 : i32, i32
  }
  func.func @transform_2(%arg0: i32) -> (i32, i32) {
    %c0_i32 = arith.constant 0 : i32
    %c0_i32_0 = arith.constant 0 : i32
    %c0_i32_1 = arith.constant 0 : i32
    return %c0_i32, %c0_i32_0 : i32, i32
  }
  func.func @transform_3(%arg0: i32) -> (i32, i32) {
    %c0_i32 = arith.constant 0 : i32
    %c0_i32_0 = arith.constant 0 : i32
    %c0_i32_1 = arith.constant 0 : i32
    return %c0_i32, %c0_i32_0 : i32, i32
  }
  func.func @transform_4(%arg0: i32) -> (i32, i32) {
    %c0_i32 = arith.constant 0 : i32
    %c0_i32_0 = arith.constant 0 : i32
    %c0_i32_1 = arith.constant 0 : i32
    return %c0_i32, %c0_i32_0 : i32, i32
  }
  func.func @transform_5(%arg0: i32) -> (i32, i32) {
    %c0_i32 = arith.constant 0 : i32
    %c0_i32_0 = arith.constant 0 : i32
    return %arg0, %c0_i32 : i32, i32
  }
}

</mosaic_0001>

<llo_original>
// kernel: detection_decoder_forward.1
$region0: #{detection_decoder_forward.1}
  #allocation0 [shape = 'u32[]', space=smem, size = 0x4, offset = 0x4, fixed_abs, tag = 'smem constant byte address 0x4 - core index']
  #allocation1 [shape = 'u32[72,128]{1,0:T(1,128)}', space=vmem, size = 0x9000, scoped, tag = 'internal scratch']
  %s0 = inlined_call_operand.hbm [shape: f32[8,32], index: 0, kind: input, shape index: {}]
  %s1 = inlined_call_operand.hbm [shape: f32[32,64], index: 1, kind: input, shape index: {}]
  %s2 = inlined_call_operand.vmem [shape: f32[1,64], index: 2, kind: input, shape index: {}]
  %s3 = inlined_call_operand.hbm [shape: f32[64,256], index: 3, kind: input, shape index: {}]
  %s4 = inlined_call_operand.vmem [shape: f32[1,256], index: 4, kind: input, shape index: {}]
  %s5 = inlined_call_operand.vmem [shape: f32[8,256], index: 5, kind: output, shape index: {}]
  %s6 = sld [smem:[#allocation0]]
  $region42: #{detection_decoder_forward.1} parent=0
    _
  %s8 = ssub.s32 1, %s6
  %s9 = scalar_select 0, %s8, %s6
  $region1: #{detection_decoder_forward.1} parent=0
    #allocation2 [shape = 'u8[4096]{0}', space=vmem, size = 0x1000, scoped, tag = 'input window, operand 0, single buffered']
    #allocation3 [shape = 's32[1]{0}', space=sflag, size = 0x4, scoped, tag = 'scoped memory for detection_decoder_forward.1']
    #allocation4 [shape = 'u8[16384]{0}', space=vmem, size = 0x4000, scoped, tag = 'input window, operand 1, single buffered']
    #allocation5 [shape = 's32[1]{0}', space=sflag, size = 0x4, scoped, tag = 'scoped memory for detection_decoder_forward.1']
    #allocation6 [shape = 'u8[65536]{0}', space=vmem, size = 0x10000, scoped, tag = 'input window, operand 3, single buffered']
    %10 = vsyncpa [#allocation3], 0
    %11 = vsyncpa [#allocation5], 0
    // Predicated region
    $region2: #{detection_decoder_forward.1} parent=1 // pred_check
      _
    $region3: #{detection_decoder_forward.1} parent=1 // pred_check_branch
      %13 = sbr.rel (0) target = $region5
    $region4: #{detection_decoder_forward.1} parent=1 // pred_region
      %15 = vsyncadd [#allocation3], 0
      %s17 = sshll.u32 %s0, 4
      %s18 = int_to_ptr.hbm [resolvable:$true] %s17
      %s19 = sshll.u32 [#allocation2], 4
      %s20 = int_to_ptr.vmem [resolvable:$true] %s19
      %22 = dma.hbm_to_vmem [thread:$0]  %s18, 128, %s20, [#allocation3]
    $region5: #{detection_decoder_forward.1} parent=1 // pred_fallthru
      _
    // Predicated region
    $region6: #{detection_decoder_forward.1} parent=1 // pred_check
      _
    $region7: #{detection_decoder_forward.1} parent=1 // pred_check_branch
      %24 = sbr.rel (0) target = $region9
    $region8: #{detection_decoder_forward.1} parent=1 // pred_region
      %26 = vsyncadd [#allocation5], 0
      %s27 = sshll.u32 %s1, 4
      %s28 = int_to_ptr.hbm [resolvable:$true] %s27
      %s29 = sshll.u32 [#allocation4], 4
      %s30 = int_to_ptr.vmem [resolvable:$true] %s29
      %35 = dma.hbm_to_vmem [thread:$0]  %s28, 512, %s30, [#allocation5], 128, 128, 8
    $region9: #{detection_decoder_forward.1} parent=1 // pred_fallthru
      _
    // Predicated region
    $region10: #{detection_decoder_forward.1} parent=1 // pred_check
      _
    $region11: #{detection_decoder_forward.1} parent=1 // pred_check_branch
      %37 = sbr.rel (0) target = $region13
    $region12: #{detection_decoder_forward.1} parent=1 // pred_region
      _
    $region13: #{detection_decoder_forward.1} parent=1 // pred_fallthru
      _
    // Predicated region
    $region14: #{detection_decoder_forward.1} parent=1 // pred_check
      _
    $region15: #{detection_decoder_forward.1} parent=1 // pred_check_branch
      %39 = sbr.rel (0) target = $region17
    $region16: #{detection_decoder_forward.1} parent=1 // pred_region
      %41 = vsyncadd [#allocation5], 0
      %s42 = sshll.u32 %s3, 4
      %s43 = int_to_ptr.hbm [resolvable:$true] %s42
      %s44 = sshll.u32 [#allocation6], 4
      %s45 = int_to_ptr.vmem [resolvable:$true] %s44
      %50 = dma.hbm_to_vmem [thread:$0]  %s43, 2048, %s45, [#allocation5], 256, 256, 16
    $region17: #{detection_decoder_forward.1} parent=1 // pred_fallthru
      _
    // Predicated region
    $region18: #{detection_decoder_forward.1} parent=1 // pred_check
      _
    $region19: #{detection_decoder_forward.1} parent=1 // pred_check_branch
      %52 = sbr.rel (0) target = $region21
    $region20: #{detection_decoder_forward.1} parent=1 // pred_region
      _
    $region21: #{detection_decoder_forward.1} parent=1 // pred_fallthru
      _
    // Predicated region
    $region22: #{detection_decoder_forward.1} parent=1 // pred_check
      _
    $region23: #{detection_decoder_forward.1} parent=1 // pred_check_branch
      %54 = sbr.rel (0) target = $region25
    $region24: #{detection_decoder_forward.1} parent=1 // pred_region
      %56 = dma.done [#allocation3], 128
    $region25: #{detection_decoder_forward.1} parent=1 // pred_fallthru
      _
    // Predicated region
    $region26: #{detection_decoder_forward.1} parent=1 // pred_check
      _
    $region27: #{detection_decoder_forward.1} parent=1 // pred_check_branch
      %58 = sbr.rel (0) target = $region29
    $region28: #{detection_decoder_forward.1} parent=1 // pred_region
      %60 = dma.done [#allocation5], 512
    $region29: #{detection_decoder_forward.1} parent=1 // pred_fallthru
      _
    // Predicated region
    $region30: #{detection_decoder_forward.1} parent=1 // pred_check
      _
    $region31: #{detection_decoder_forward.1} parent=1 // pred_check_branch
      %62 = sbr.rel (0) target = $region33
    $region32: #{detection_decoder_forward.1} parent=1 // pred_region
      %64 = dma.done [#allocation5], 2048
    $region33: #{detection_decoder_forward.1} parent=1 // pred_fallthru
      _
    %v65 = vld [vmem:[#allocation2] sm:$0xff]
    %v66 = vld [vmem:[#allocation4] sm:$0xff]
    %v67 = vld [vmem:[#allocation4 + $0x8] sm:$0xff]
    %v68 = vld [vmem:[#allocation4 + $0x10] sm:$0xff]
    %v69 = vld [vmem:[#allocation4 + $0x18] sm:$0xff]
    %v70 = vld [vmem:[%s2] sm:$0x1]
    %v72 = vperm.slane %v70, 0
    %vm74 = vcmask 261120
    %v76 = vsel %vm74, %v65, 0
    %78 = vmatpush.msra.mxu0 0.0
    %79 = vmatpush.msra.mxu0 0.0
    %80 = vmatpush.msra.mxu0 0.0
    %81 = vmatpush.msra.mxu0 0.0
    %82 = vmatpush.msra.mxu0 0.0
    %83 = vmatpush.msra.mxu0 0.0
    %84 = vmatpush.msra.mxu0 0.0
    %85 = vmatpush.msra.mxu0 0.0
    %86 = vmatpush.msra.mxu0 0.0
    %87 = vmatpush.msra.mxu0 0.0
    %88 = vmatpush.msra.mxu0 0.0
    %89 = vmatpush.msra.mxu0 0.0
    %90 = vmatpush.msra.mxu0 %v69
    %91 = vmatpush.msra.mxu0 %v68
    %92 = vmatpush.msra.mxu0 %v67
    %93 = vmatpush.msra.mxu0 %v66
    %94 = vmatmul.f32.gmra.mxu0 %v76
    %v95 = vpop.f32.mrf.mxu0
    %v96 = vadd.f32 %v72, %v95
    %97 = vdwg.mxu0
    %v98 = vmax.f32 %v96, 0.0
    %v99 = vld [vmem:[#allocation6] sm:$0xff]
    %v100 = vld [vmem:[#allocation6 + $0x8] sm:$0xff]
    %v101 = vld [vmem:[#allocation6 + $0x10] sm:$0xff]
    %v102 = vld [vmem:[#allocation6 + $0x18] sm:$0xff]
    %v103 = vld [vmem:[#allocation6 + $0x20] sm:$0xff]
    %v104 = vld [vmem:[#allocation6 + $0x28] sm:$0xff]
    %v105 = vld [vmem:[#allocation6 + $0x30] sm:$0xff]
    %v106 = vld [vmem:[#allocation6 + $0x38] sm:$0xff]
    %v107 = vld [vmem:[#allocation6 + $0x40] sm:$0xff]
    %v108 = vld [vmem:[#allocation6 + $0x48] sm:$0xff]
    %v109 = vld [vmem:[#allocation6 + $0x50] sm:$0xff]
    %v110 = vld [vmem:[#allocation6 + $0x58] sm:$0xff]
    %v111 = vld [vmem:[#allocation6 + $0x60] sm:$0xff]
    %v112 = vld [vmem:[#allocation6 + $0x68] sm:$0xff]
    %v113 = vld [vmem:[#allocation6 + $0x70] sm:$0xff]
    %v114 = vld [vmem:[#allocation6 + $0x78] sm:$0xff]
    %v115 = vld [vmem:[%s4] sm:$0x3]
    %v117 = vperm.slane %v115, 0
    %v118 = vperm.slane %v115, 1
    %vm121 = vcmask 523264
    %v123 = vsel %vm121, %v98, 0
    %125 = vmatpush.msra.mxu0 0.0
    %126 = vmatpush.msra.mxu0 0.0
    %127 = vmatpush.msra.mxu0 0.0
    %128 = vmatpush.msra.mxu0 0.0
    %129 = vmatpush.msra.mxu0 0.0
    %130 = vmatpush.msra.mxu0 0.0
    %131 = vmatpush.msra.mxu0 0.0
    %132 = vmatpush.msra.mxu0 0.0
    %133 = vmatpush.msra.mxu0 %v113
    %134 = vmatpush.msra.mxu0 %v111
    %135 = vmatpush.msra.mxu0 %v109
    %136 = vmatpush.msra.mxu0 %v107
    %137 = vmatpush.msra.mxu0 %v105
    %138 = vmatpush.msra.mxu0 %v103
    %139 = vmatpush.msra.mxu0 %v101
    %140 = vmatpush.msra.mxu0 %v99
    %141 = vmatmul.f32.gmra.mxu0 %v123
    %v142 = vpop.f32.mrf.mxu0
    %v143 = vadd.f32 %v117, %v142
    %144 = vdwg.mxu0
    %145 = vmatpush.msra.mxu0 0.0
    %146 = vmatpush.msra.mxu0 0.0
    %147 = vmatpush.msra.mxu0 0.0
    %148 = vmatpush.msra.mxu0 0.0
    %149 = vmatpush.msra.mxu0 0.0
    %150 = vmatpush.msra.mxu0 0.0
    %151 = vmatpush.msra.mxu0 0.0
    %152 = vmatpush.msra.mxu0 0.0
    %153 = vmatpush.msra.mxu0 %v114
    %154 = vmatpush.msra.mxu0 %v112
    %155 = vmatpush.msra.mxu0 %v110
    %156 = vmatpush.msra.mxu0 %v108
    %157 = vmatpush.msra.mxu0 %v106
    %158 = vmatpush.msra.mxu0 %v104
    %159 = vmatpush.msra.mxu0 %v102
    %160 = vmatpush.msra.mxu0 %v100
    %161 = vmatmul.f32.gmra.mxu0 %v123
    %v162 = vpop.f32.mrf.mxu0
    %v163 = vadd.f32 %v118, %v162
    %164 = vdwg.mxu0
    %v165 = vxor.u32 %v143, 2147483648
    %v166 = vxor.u32 %v163, 2147483648
    %v167 = vmul.f32 %v165, 1.442695
    %v168 = vpow.pop %v167
    %v169 = vmul.f32 %v166, 1.442695
    %v170 = vpow.pop %v169
    %v171 = vadd.f32 %v168, 1.0
    %v172 = vadd.f32 %v170, 1.0
    %v173 = vrcp.pop %v171
    %v174 = vmul.f32 %v171, %v173
    %v175 = vsub.f32 1.0, %v174
    %v176 = vmul.f32 %v173, %v175
    %v177 = vadd.f32 %v173, %v176
    %vm178 = vweird.f32 %v171
    %vm179 = vweird.f32 %v173
    %vm180 = vmor %vm178, %vm179
    %v181 = vsel %vm180, %v173, %v177
    %v182 = vand.u32 2147483647, %v171
    %vm183 = vcmp.eq.f32.partialorder %v182, 8.507059e+37
    %v184 = vand.u32 %v171, 2147483648
    %v185 = vor.u32 1.1754944e-38, %v184
    %v186 = vsel %vm183, %v185, %v181
    %v187 = vmul.f32 1.0, %v186
    %v188 = vrcp.pop %v172
    %v189 = vmul.f32 %v172, %v188
    %v190 = vsub.f32 1.0, %v189
    %v191 = vmul.f32 %v188, %v190
    %v192 = vadd.f32 %v188, %v191
    %vm193 = vweird.f32 %v172
    %vm194 = vweird.f32 %v188
    %vm195 = vmor %vm193, %vm194
    %v196 = vsel %vm195, %v188, %v192
    %v197 = vand.u32 2147483647, %v172
    %vm198 = vcmp.eq.f32.partialorder %v197, 8.507059e+37
    %v199 = vand.u32 %v172, 2147483648
    %v200 = vor.u32 1.1754944e-38, %v199
    %v201 = vsel %vm198, %v200, %v196
    %v202 = vmul.f32 1.0, %v201
    %203 = vst [vmem:[%s5] sm:$0xff] %v187
    %204 = vst [vmem:[%s5 + $0x8] sm:$0xff] %v202
    // Predicated region
    $region34: #{detection_decoder_forward.1} parent=1 // pred_check
      _
    $region35: #{detection_decoder_forward.1} parent=1 // pred_check_branch
      %206 = sbr.rel (0) target = $region37
    $region36: #{detection_decoder_forward.1} parent=1 // pred_region
      _
    $region37: #{detection_decoder_forward.1} parent=1 // pred_fallthru
      _
    // Predicated region
    $region38: #{detection_decoder_forward.1} parent=1 // pred_check
      _
    $region39: #{detection_decoder_forward.1} parent=1 // pred_check_branch
      %208 = sbr.rel (0) target = $region41
    $region40: #{detection_decoder_forward.1} parent=1 // pred_region
      _
    $region41: #{detection_decoder_forward.1} parent=1 // pred_fallthru
      _
    %209 = vsyncpa [#allocation3], 1
    %210 = vsyncpa [#allocation5], 1

</llo_original>
